<compile_context>
chip_gen: v6e
topology: v6e:2x2x1
jax: 0.10.0
libtpu: 0.0.40
codegen_flags: <defaults>
</compile_context>

<pallas_src>
import jax
import jax.numpy as jnp
from jax.experimental import pallas as pl
from jax.experimental.pallas import tpu as pltpu


_INV_255 = 1.0 / 255.0
_LANE_CHOICES = (1024, 512, 256, 128)   # lane-dense widths (multiples of 128)
_OUT_BLOCK_BYTES = 4 * 1024 * 1024      # ~4 MiB f32 output block target
_ROW_ALIGN = 32                         # int8 sublane packing: (32, 128) tiles
_MIN_GRID_STEPS = 4                     # let v7x's 2 TCs both get work
_VMEM_LIMIT_BYTES = 32 * 1024 * 1024    # in+out double-buffered + widen temps


# ---------------------------------------------------------------------------
# Pallas kernel: fused uint8 -> float32 cast and scale by 1/255.
# ---------------------------------------------------------------------------
def _u8_scale_kernel(x_ref, o_ref):
    # Input arrives bitcast as int8 (well-supported 8-bit path on Mosaic);
    # widen and mask off the sign-extension to recover the unsigned 0..255.
    v = x_ref[...].astype(jnp.int32) & jnp.int32(0xFF)
    # Division folded to a multiply by the reciprocal (<= 1 ulp vs true div).
    o_ref[...] = v.astype(jnp.float32) * jnp.float32(_INV_255)


def _pick_tile_rows(rows: int, lanes: int, out_itemsize: int) -> int:
    """Byte-budgeted row-block size (multiple of 32), with a megacore cap."""
    budget = max(_OUT_BLOCK_BYTES // (lanes * out_itemsize), _ROW_ALIGN)
    tile = max((budget // _ROW_ALIGN) * _ROW_ALIGN, _ROW_ALIGN)
    # Prefer >= _MIN_GRID_STEPS grid steps when the slab is big enough so the
    # "parallel" grid axis can be sharded across v7x's two TensorCores.
    if rows >= 2 * _ROW_ALIGN:
        cap = max(((rows // _MIN_GRID_STEPS) // _ROW_ALIGN) * _ROW_ALIGN,
                  _ROW_ALIGN)
        tile = min(tile, cap)
    if tile >= rows:
        tile = rows  # full-extent block is always layout-legal
    return tile


def _u8_scale_pallas(x: jax.Array) -> jax.Array:
    orig_shape = x.shape
    total = x.size
    lanes = next(c for c in _LANE_CHOICES if total % c == 0)
    rows = total // lanes

    # Free bitcast view: keeps 1 byte/elem HBM reads; fixup happens in-kernel.
    x2d = jax.lax.bitcast_convert_type(x, jnp.int8).reshape(rows, lanes)

    out_dtype = jnp.float32
    tile_rows = _pick_tile_rows(rows, lanes, jnp.dtype(out_dtype).itemsize)
    grid = (pl.cdiv(rows, tile_rows),)

    out2d = pl.pallas_call(
        _u8_scale_kernel,
        out_shape=jax.ShapeDtypeStruct((rows, lanes), out_dtype),
        grid_spec=pltpu.PrefetchScalarGridSpec(
            num_scalar_prefetch=0,
            grid=grid,
            # NOTE: a Buffered(3) input sweep was considered (0-5% upside on
            # v7x) but omitted to keep the compile path maximally robust.
            in_specs=[pl.BlockSpec((tile_rows, lanes), lambda i: (i, 0))],
            out_specs=pl.BlockSpec((tile_rows, lanes), lambda i: (i, 0)),
        ),
        compiler_params=pltpu.CompilerParams(
            dimension_semantics=("parallel",),
            vmem_limit_bytes=_VMEM_LIMIT_BYTES,
        ),
        cost_estimate=pl.CostEstimate(
            flops=total,
            transcendentals=0,
            bytes_accessed=total * (1 + jnp.dtype(out_dtype).itemsize),
        ),
    )(x2d)

    return out2d.reshape(orig_shape)


# ---------------------------------------------------------------------------
# Wrapper: FunctionalModule.forward for the canonical video functional.
# ---------------------------------------------------------------------------
def functional_module_forward(x: jax.Array) -> jax.Array:
    """Apply the wrapped functional (x / 255.0), Pallas-accelerated for uint8.

    uint8 (canonical LRS video frames) promotes to float32 via the fused
    Pallas kernel; floating input keeps its dtype via a fuse-friendly plain
    JAX path (per perf review, a standalone pallas_call would only add an
    unnecessary HBM round-trip there).
    """
    # TODO(synk): FunctionalModule wraps an *arbitrary* Python callable; only
    # the canonical elementwise `x / 255.0` preprocessing is implemented.
    if jnp.issubdtype(x.dtype, jnp.floating):
        return x / 255.0
    if x.dtype != jnp.uint8 or x.size == 0 or x.size % 128 != 0:
        # Rare fallback (non-uint8 integers, empty, or element count not a
        # multiple of 128): the fused plain-JAX convert+divide is already at
        # minimal HBM traffic, and avoids the old pad/slice double round-trip.
        return x.astype(jnp.float32) / 255.0
    return _u8_scale_pallas(x)


# ---------------------------------------------------------------------------
# Reference (plain JAX) for correctness check
# ---------------------------------------------------------------------------
def _reference(x):
    if not jnp.issubdtype(x.dtype, jnp.floating):
        x = x.astype(jnp.float32)
    return x / 255.0


if __name__ == "__main__":
    key = jax.random.PRNGKey(0)
    kf, k1, k2, k3 = jax.random.split(key, 4)

    # Float32 path (plain JAX, fuse-friendly).
    shape_f = (2, 4, 16, 16)
    x_f32 = jax.random.uniform(kf, shape_f, dtype=jnp.float32) * 255.0
    out_f32 = jax.block_until_ready(functional_module_forward(x_f32))
    assert out_f32.shape == shape_f and out_f32.dtype == jnp.float32
    assert jnp.allclose(out_f32, _reference(x_f32), rtol=1e-6, atol=1e-6)

    # uint8 path, small frame block -> single full-extent Pallas block.
    shape_u8 = (2, 4, 16, 16)
    x_u8 = jax.random.randint(k1, shape_u8, 0, 256, dtype=jnp.int32).astype(jnp.uint8)
    out_u8 = jax.block_until_ready(functional_module_forward(x_u8))
    assert out_u8.shape == shape_u8 and out_u8.dtype == jnp.float32
    assert jnp.allclose(out_u8, _reference(x_u8), rtol=1e-6, atol=1e-6)

    # uint8 path, larger frame stack -> multi-step grid with a partial final
    # row block (rows=72, tile_rows=32, grid=(3,)).
    shape_big = (2, 3, 96, 128)
    x_big = jax.random.randint(k2, shape_big, 0, 256, dtype=jnp.int32).astype(jnp.uint8)
    out_big = jax.block_until_ready(functional_module_forward(x_big))
    assert out_big.shape == shape_big and out_big.dtype == jnp.float32
    assert jnp.allclose(out_big, _reference(x_big), rtol=1e-6, atol=1e-6)

    # uint8 path, odd element count (231) -> plain-JAX fallback, no padding.
    shape_odd = (3, 7, 11)
    x_odd = jax.random.randint(k3, shape_odd, 0, 256, dtype=jnp.int32).astype(jnp.uint8)
    out_odd = jax.block_until_ready(functional_module_forward(x_odd))
    assert out_odd.shape == shape_odd and out_odd.dtype == jnp.float32
    assert jnp.allclose(out_odd, _reference(x_odd), rtol=1e-6, atol=1e-6)

    print("KERNEL_OK")
</pallas_src>

<mosaic_0001>
module attributes {stable_mosaic.version = 11 : i64} {
  func.func @_u8_scale_kernel(%arg0: i32, %arg1: memref<2x1024xi8, #tpu.memory_space<vmem>>, %arg2: memref<2x1024xf32, #tpu.memory_space<vmem>>) attributes {dimension_semantics = [#tpu.dimension_semantics<parallel>], iteration_bounds = array<i64: 1>, scalar_prefetch = 0 : i64, scratch_operands = 0 : i64, tpu.core_type = #tpu.core_type<tc>, window_params = [{transform_indices = @transform_0, window_bounds = array<i64: 2, 1024>}, {transform_indices = @transform_1, window_bounds = array<i64: 2, 1024>}]} {
    %c0 = arith.constant 0 : index
    %c0_0 = arith.constant 0 : index
    %0 = vector.load %arg1[%c0, %c0_0] : memref<2x1024xi8, #tpu.memory_space<vmem>>, vector<2x1024xi8>
    %1 = arith.extsi %0 : vector<2x1024xi8> to vector<2x1024xi32>
    %c255_i32 = arith.constant 255 : i32
    %2 = vector.broadcast %c255_i32 : i32 to vector<2x1024xi32>
    %3 = arith.andi %1, %2 : vector<2x1024xi32>
    %4 = arith.sitofp %3 : vector<2x1024xi32> to vector<2x1024xf32>
    %cst = arith.constant 0.00392156886 : f32
    %5 = vector.broadcast %cst : f32 to vector<2x1024xf32>
    %6 = arith.mulf %4, %5 : vector<2x1024xf32>
    %c0_1 = arith.constant 0 : index
    %c0_2 = arith.constant 0 : index
    %7 = vector.load %arg2[%c0_1, %c0_2] : memref<2x1024xf32, #tpu.memory_space<vmem>>, vector<2x1024xf32>
    tpu.vector_store %arg2[%c0_1, %c0_2], %6 {strides = array<i32>} : memref<2x1024xf32, #tpu.memory_space<vmem>>, vector<2x1024xf32>,
    return
  }
  func.func @transform_0(%arg0: i32) -> (i32, i32) {
    %c0_i32 = arith.constant 0 : i32
    %c0_i32_0 = arith.constant 0 : i32
    return %arg0, %c0_i32 : i32, i32
  }
  func.func @transform_1(%arg0: i32) -> (i32, i32) {
    %c0_i32 = arith.constant 0 : i32
    %c0_i32_0 = arith.constant 0 : i32
    return %arg0, %c0_i32 : i32, i32
  }
}

</mosaic_0001>

<llo_original>
// kernel: tpu_custom_call.1
$region0: #{tpu_custom_call.1}
  #allocation0 [shape = 'u32[]', space=smem, size = 0x4, offset = 0x4, fixed_abs, tag = 'smem constant byte address 0x4 - core index']
  #allocation1 [shape = 'u32[144,128]{1,0:T(1,128)}', space=vmem, size = 0x12000, scoped, tag = 'internal scratch']
  %s0 = inlined_call_operand.hbm [shape: s8[2,1024], index: 0, kind: input, shape index: {}]
  %s1 = inlined_call_operand.hbm [shape: f32[2,1024], index: 1, kind: output, shape index: {}]
  %s2 = sld [smem:[#allocation0]]
  $region18: #{tpu_custom_call.1} parent=0
    _
  %s4 = ssub.s32 1, %s2
  %s5 = scalar_select 0, %s4, %s2
  $region1: #{tpu_custom_call.1} parent=0
    #allocation2 [shape = 'u8[4096]{0}', space=vmem, size = 0x1000, scoped, tag = 'input window, operand 0, single buffered']
    #allocation3 [shape = 's32[1]{0}', space=sflag, size = 0x4, scoped, tag = 'scoped memory for tpu_custom_call.1']
    #allocation4 [shape = 's32[1]{0}', space=sflag, size = 0x4, scoped, tag = 'scoped memory for tpu_custom_call.1']
    #allocation5 [shape = 'u8[8192]{0}', space=vmem, size = 0x2000, scoped, tag = 'output window, operand 0, single buffered']
    %6 = vsyncpa [#allocation3], 0
    %7 = vsyncpa [#allocation4], 0
    // Predicated region
    $region2: #{tpu_custom_call.1} parent=1 // pred_check
      _
    $region3: #{tpu_custom_call.1} parent=1 // pred_check_branch
      %9 = sbr.rel (0) target = $region5
    $region4: #{tpu_custom_call.1} parent=1 // pred_region
      %s11 = ssub.s32 128, 128
      %12 = vsyncadd [#allocation3], %s11
      %s14 = sshll.u32 [#allocation2], 4
      %s15 = int_to_ptr.vmem [resolvable:$true] %s14
      %17 = dma.hbm_to_vmem [thread:$0]  %s0, 128, %s15, [#allocation3]
    $region5: #{tpu_custom_call.1} parent=1 // pred_fallthru
      _
    // Predicated region
    $region6: #{tpu_custom_call.1} parent=1 // pred_check
      _
    $region7: #{tpu_custom_call.1} parent=1 // pred_check_branch
      %19 = sbr.rel (0) target = $region9
    $region8: #{tpu_custom_call.1} parent=1 // pred_region
      %20 = dma.done [#allocation3], 128
    $region9: #{tpu_custom_call.1} parent=1 // pred_fallthru
      _
    %v21 = vld [vmem:[#allocation2] sm:$0xff]
    %v22 = vunpack.c.0.s8 %v21
    %v23 = vunpack.c.1.s8 %v21
    %v24 = vunpack.c.2.s8 %v21
    %v25 = vunpack.c.3.s8 %v21
    %v26 = vand.u32 %v22, 255
    %v27 = vand.u32 %v23, 255
    %v28 = vand.u32 %v24, 255
    %v29 = vand.u32 %v25, 255
    %v30 = vcvt.s32.f32 %v26
    %v31 = vcvt.s32.f32 %v27
    %v32 = vcvt.s32.f32 %v28
    %v33 = vcvt.s32.f32 %v29
    %v34 = vmul.f32 %v30, 0.003921569
    %v35 = vmul.f32 %v31, 0.003921569
    %v36 = vmul.f32 %v32, 0.003921569
    %v37 = vmul.f32 %v33, 0.003921569
    %v43 = vunpack.c.l.s4 1983009808
    %v44 = vunpack.c.0.s8 %v43
    %v45 = vlaneseq
    %v46 = vshrl.u32 %v45, 7
    %v47 = vsub.s32 %v44, %v46
    %v48 = vrot.slane %v34, %v47
    %v50 = vunpack.c.l.s4 1983009808
    %v51 = vunpack.c.0.s8 %v50
    %v52 = vlaneseq
    %v53 = vshrl.u32 %v52, 7
    %v54 = vsub.s32 %v51, %v53
    %v55 = vrot.slane %v35, %v54
    %v56 = vcombine.low %v48, %v55
    %v58 = vunpack.c.l.s4 1983009808
    %v59 = vunpack.c.0.s8 %v58
    %v60 = vlaneseq
    %v61 = vshrl.u32 %v60, 7
    %v62 = vsub.s32 %v59, %v61
    %v63 = vrot.slane %v36, %v62
    %v65 = vunpack.c.l.s4 1983009808
    %v66 = vunpack.c.0.s8 %v65
    %v67 = vlaneseq
    %v68 = vshrl.u32 %v67, 7
    %v69 = vsub.s32 %v66, %v68
    %v70 = vrot.slane %v37, %v69
    %v71 = vcombine.low %v63, %v70
    %74 = vst [vmem:[#allocation5] sm:$0xff] %v56
    %75 = vst [vmem:[#allocation5 + $0x8] sm:$0xff] %v71
    // Predicated region
    $region10: #{tpu_custom_call.1} parent=1 // pred_check
      _
    $region11: #{tpu_custom_call.1} parent=1 // pred_check_branch
      %77 = sbr.rel (0) target = $region13
    $region12: #{tpu_custom_call.1} parent=1 // pred_region
      %s79 = ssub.s32 256, 256
      %80 = vsyncadd [#allocation4], %s79
      %s82 = sshll.u32 [#allocation5], 4
      %s83 = int_to_ptr.vmem [resolvable:$true] %s82
      %85 = dma.vmem_to_hbm [thread:$0]  %s83, 256, %s1, [#allocation4]
    $region13: #{tpu_custom_call.1} parent=1 // pred_fallthru
      _
    // Predicated region
    $region14: #{tpu_custom_call.1} parent=1 // pred_check
      _
    $region15: #{tpu_custom_call.1} parent=1 // pred_check_branch
      %87 = sbr.rel (0) target = $region17
    $region16: #{tpu_custom_call.1} parent=1 // pred_region
      %88 = dma.done [#allocation4], 256
    $region17: #{tpu_custom_call.1} parent=1 // pred_fallthru
      _
    %89 = vsyncpa [#allocation3], 1
    %90 = vsyncpa [#allocation4], 1

</llo_original>
